<compile_context>
chip_gen: v7x
topology: tpu7x:2x2x1
jax: 0.10.0
libtpu: 0.0.40
codegen_flags: <defaults>
</compile_context>

<pallas_src>
import functools

import jax
import jax.numpy as jnp
from jax.experimental import pallas as pl
from jax.experimental.pallas import tpu as pltpu


def _local_variance_kernel(x_ref, o_ref, *, ws, h, w):
    # x_ref / o_ref: (B, H, W) block of the (N*C, H, W) array.  The block spans
    # the full spatial extent, so the circular window never leaves the block.
    p = ws // 2
    inv = jnp.float32(1.0 / float(ws * ws))

    x = x_ref[...].astype(jnp.float32)  # upcast in-kernel (VPU); HBM stays narrow

    # Use XLU lane rotations for the W-axis circular sum only when the lane
    # axis spans whole vregs (that is where unaligned lane slices are actually
    # expensive and where the roll lowering is unambiguous); otherwise build a
    # small wrap halo and use static slices (single-vreg case).
    use_lane_roll = (w % 128 == 0) and (h % 8 == 0)

    def h_circ_sum(a):
        # Sublane-axis circular box sum: one wrap halo + ws static slices.
        ah = jnp.concatenate([a[:, h - p:, :], a, a[:, :p, :]], axis=1)
        acc = ah[:, 0:h, :]
        for dy in range(1, ws):
            acc = acc + ah[:, dy:dy + h, :]
        return acc

    def w_circ_sum(a):
        if use_lane_roll:
            # sum_{d=-p..p} a[..., (j+d) % w]; the window is symmetric in d, so
            # the result is independent of the roll sign convention.
            flat = a.reshape(-1, w)            # layout-preserving: h % 8 == 0
            acc = flat
            for d in range(1, p + 1):
                acc = acc + pltpu.roll(flat, shift=d, axis=1)
                acc = acc + pltpu.roll(flat, shift=w - d, axis=1)
            return acc.reshape(a.shape)
        # Fallback: wrap halo + static lane slices (W < a full vreg of lanes).
        aw = jnp.concatenate([a[..., w - p:], a, a[..., :p]], axis=-1)
        acc = aw[..., 0:w]
        for dx in range(1, ws):
            acc = acc + aw[..., dx:dx + w]
        return acc

    def circ_box_sum(a):
        return w_circ_sum(h_circ_sum(a))

    s1 = circ_box_sum(x)        # sum of x   over the circular ws x ws window
    s2 = circ_box_sum(x * x)    # sum of x^2 over the circular ws x ws window

    mean = s1 * inv
    o_ref[...] = (s2 * inv - mean * mean).astype(o_ref.dtype)


def _pick_block_batch(nc, h, w, itemsize):
    """Number of (n, c) slices per block: ~1 MiB of native-dtype input per
    block, an exact divisor of nc, and >= 2 grid steps when nc allows it
    (v7x has 2 TensorCores; on v5e/v6e this is neutral)."""
    slice_bytes = max(1, h * w * itemsize)
    b = max(1, min(nc, (1 * 1024 * 1024) // slice_bytes))
    if nc >= 2:
        b = min(b, max(1, nc // 2))
    while nc % b != 0:
        b -= 1
    return int(b)


def local_variance_net(x, window_size):
    """x: (N, C, H, W). Matches LocalVarianceNet(C, window_size)(x) for odd
    window_size (circular box-mean variance, same spatial size output)."""
    N, C, H, W = x.shape
    ws = int(window_size)
    # TODO(synk): even window_size (PyTorch emits an (H+1)x(W+1) output) is not implemented.
    assert ws % 2 == 1, "only odd window_size is supported"
    p = ws // 2
    assert p <= H and p <= W, "window halo larger than the image"

    nc = N * C
    xr = x.reshape(nc, H, W)                       # free reshape of contiguous NCHW
    b = _pick_block_batch(nc, H, W, x.dtype.itemsize)

    kernel = functools.partial(_local_variance_kernel, ws=ws, h=H, w=W)
    out = pl.pallas_call(
        kernel,
        out_shape=jax.ShapeDtypeStruct((nc, H, W), x.dtype),
        grid=(nc // b,),
        in_specs=[pl.BlockSpec((b, H, W), lambda i: (i, 0, 0))],
        out_specs=pl.BlockSpec((b, H, W), lambda i: (i, 0, 0)),
        compiler_params=pltpu.CompilerParams(
            dimension_semantics=("parallel",),
        ),
    )(xr)
    return out.reshape(N, C, H, W)


def _reference_local_variance(x, window_size):
    # Pure-JAX reference with identical semantics (circular box mean).
    N, C, H, W = x.shape
    p = window_size // 2
    h_out = H + 2 * p - window_size + 1
    w_out = W + 2 * p - window_size + 1
    xpad = jnp.pad(x, ((0, 0), (0, 0), (p, p), (p, p)), mode="wrap").astype(jnp.float32)

    def box_mean(a):
        acc = jnp.zeros((N, C, h_out, w_out), jnp.float32)
        for dy in range(window_size):
            for dx in range(window_size):
                acc = acc + a[:, :, dy:dy + h_out, dx:dx + w_out]
        return acc / float(window_size * window_size)

    return box_mean(xpad * xpad) - box_mean(xpad) ** 2


if __name__ == "__main__":
    key = jax.random.PRNGKey(0)
    N, C, H, W = 2, 4, 16, 16
    window_size = 5  # odd window -> same spatial size output, as in the module

    x = jax.random.normal(key, (N, C, H, W), dtype=jnp.float32)

    out = jax.block_until_ready(local_variance_net(x, window_size))
    ref = _reference_local_variance(x, window_size)

    assert out.shape == (N, C, H, W), out.shape
    assert jnp.allclose(out, ref.astype(out.dtype), atol=1e-5, rtol=1e-4), float(
        jnp.max(jnp.abs(out - ref))
    )

    print("KERNEL_OK")
</pallas_src>

<mosaic_0001>
module attributes {stable_mosaic.version = 11 : i64} {
  func.func @_local_variance_kernel(%arg0: i32, %arg1: memref<4x16x16xf32, #tpu.memory_space<vmem>>, %arg2: memref<4x16x16xf32, #tpu.memory_space<vmem>>) attributes {dimension_semantics = [#tpu.dimension_semantics<parallel>], iteration_bounds = array<i64: 2>, scalar_prefetch = 0 : i64, scratch_operands = 0 : i64, tpu.core_type = #tpu.core_type<tc>, window_params = [{transform_indices = @transform_0, window_bounds = array<i64: 4, 16, 16>}, {transform_indices = @transform_1, window_bounds = array<i64: 4, 16, 16>}]} {
    %c0 = arith.constant 0 : index
    %c0_0 = arith.constant 0 : index
    %c0_1 = arith.constant 0 : index
    %0 = vector.load %arg1[%c0, %c0_0, %c0_1] : memref<4x16x16xf32, #tpu.memory_space<vmem>>, vector<4x16x16xf32>
    %1 = vector.extract_strided_slice %0 {offsets = [0, 14, 0], sizes = [4, 2, 16], strides = [1, 1, 1]} : vector<4x16x16xf32> to vector<4x2x16xf32>
    %2 = vector.extract_strided_slice %0 {offsets = [0, 0, 0], sizes = [4, 2, 16], strides = [1, 1, 1]} : vector<4x16x16xf32> to vector<4x2x16xf32>
    %3 = tpu.concatenate %1, %0, %2 in 1 : vector<4x2x16xf32>, vector<4x16x16xf32>, vector<4x2x16xf32> -> vector<4x20x16xf32>
    %4 = vector.extract_strided_slice %3 {offsets = [0, 0, 0], sizes = [4, 16, 16], strides = [1, 1, 1]} : vector<4x20x16xf32> to vector<4x16x16xf32>
    %5 = vector.extract_strided_slice %3 {offsets = [0, 1, 0], sizes = [4, 16, 16], strides = [1, 1, 1]} : vector<4x20x16xf32> to vector<4x16x16xf32>
    %6 = arith.addf %4, %5 : vector<4x16x16xf32>
    %7 = vector.extract_strided_slice %3 {offsets = [0, 2, 0], sizes = [4, 16, 16], strides = [1, 1, 1]} : vector<4x20x16xf32> to vector<4x16x16xf32>
    %8 = arith.addf %6, %7 : vector<4x16x16xf32>
    %9 = vector.extract_strided_slice %3 {offsets = [0, 3, 0], sizes = [4, 16, 16], strides = [1, 1, 1]} : vector<4x20x16xf32> to vector<4x16x16xf32>
    %10 = arith.addf %8, %9 : vector<4x16x16xf32>
    %11 = vector.extract_strided_slice %3 {offsets = [0, 4, 0], sizes = [4, 16, 16], strides = [1, 1, 1]} : vector<4x20x16xf32> to vector<4x16x16xf32>
    %12 = arith.addf %10, %11 : vector<4x16x16xf32>
    %13 = vector.extract_strided_slice %12 {offsets = [0, 0, 14], sizes = [4, 16, 2], strides = [1, 1, 1]} : vector<4x16x16xf32> to vector<4x16x2xf32>
    %14 = vector.extract_strided_slice %12 {offsets = [0, 0, 0], sizes = [4, 16, 2], strides = [1, 1, 1]} : vector<4x16x16xf32> to vector<4x16x2xf32>
    %15 = tpu.concatenate %13, %12, %14 in 2 : vector<4x16x2xf32>, vector<4x16x16xf32>, vector<4x16x2xf32> -> vector<4x16x20xf32>
    %16 = vector.extract_strided_slice %15 {offsets = [0, 0, 0], sizes = [4, 16, 16], strides = [1, 1, 1]} : vector<4x16x20xf32> to vector<4x16x16xf32>
    %17 = vector.extract_strided_slice %15 {offsets = [0, 0, 1], sizes = [4, 16, 16], strides = [1, 1, 1]} : vector<4x16x20xf32> to vector<4x16x16xf32>
    %18 = arith.addf %16, %17 : vector<4x16x16xf32>
    %19 = vector.extract_strided_slice %15 {offsets = [0, 0, 2], sizes = [4, 16, 16], strides = [1, 1, 1]} : vector<4x16x20xf32> to vector<4x16x16xf32>
    %20 = arith.addf %18, %19 : vector<4x16x16xf32>
    %21 = vector.extract_strided_slice %15 {offsets = [0, 0, 3], sizes = [4, 16, 16], strides = [1, 1, 1]} : vector<4x16x20xf32> to vector<4x16x16xf32>
    %22 = arith.addf %20, %21 : vector<4x16x16xf32>
    %23 = vector.extract_strided_slice %15 {offsets = [0, 0, 4], sizes = [4, 16, 16], strides = [1, 1, 1]} : vector<4x16x20xf32> to vector<4x16x16xf32>
    %24 = arith.addf %22, %23 : vector<4x16x16xf32>
    %25 = arith.mulf %0, %0 : vector<4x16x16xf32>
    %26 = vector.extract_strided_slice %25 {offsets = [0, 14, 0], sizes = [4, 2, 16], strides = [1, 1, 1]} : vector<4x16x16xf32> to vector<4x2x16xf32>
    %27 = vector.extract_strided_slice %25 {offsets = [0, 0, 0], sizes = [4, 2, 16], strides = [1, 1, 1]} : vector<4x16x16xf32> to vector<4x2x16xf32>
    %28 = tpu.concatenate %26, %25, %27 in 1 : vector<4x2x16xf32>, vector<4x16x16xf32>, vector<4x2x16xf32> -> vector<4x20x16xf32>
    %29 = vector.extract_strided_slice %28 {offsets = [0, 0, 0], sizes = [4, 16, 16], strides = [1, 1, 1]} : vector<4x20x16xf32> to vector<4x16x16xf32>
    %30 = vector.extract_strided_slice %28 {offsets = [0, 1, 0], sizes = [4, 16, 16], strides = [1, 1, 1]} : vector<4x20x16xf32> to vector<4x16x16xf32>
    %31 = arith.addf %29, %30 : vector<4x16x16xf32>
    %32 = vector.extract_strided_slice %28 {offsets = [0, 2, 0], sizes = [4, 16, 16], strides = [1, 1, 1]} : vector<4x20x16xf32> to vector<4x16x16xf32>
    %33 = arith.addf %31, %32 : vector<4x16x16xf32>
    %34 = vector.extract_strided_slice %28 {offsets = [0, 3, 0], sizes = [4, 16, 16], strides = [1, 1, 1]} : vector<4x20x16xf32> to vector<4x16x16xf32>
    %35 = arith.addf %33, %34 : vector<4x16x16xf32>
    %36 = vector.extract_strided_slice %28 {offsets = [0, 4, 0], sizes = [4, 16, 16], strides = [1, 1, 1]} : vector<4x20x16xf32> to vector<4x16x16xf32>
    %37 = arith.addf %35, %36 : vector<4x16x16xf32>
    %38 = vector.extract_strided_slice %37 {offsets = [0, 0, 14], sizes = [4, 16, 2], strides = [1, 1, 1]} : vector<4x16x16xf32> to vector<4x16x2xf32>
    %39 = vector.extract_strided_slice %37 {offsets = [0, 0, 0], sizes = [4, 16, 2], strides = [1, 1, 1]} : vector<4x16x16xf32> to vector<4x16x2xf32>
    %40 = tpu.concatenate %38, %37, %39 in 2 : vector<4x16x2xf32>, vector<4x16x16xf32>, vector<4x16x2xf32> -> vector<4x16x20xf32>
    %41 = vector.extract_strided_slice %40 {offsets = [0, 0, 0], sizes = [4, 16, 16], strides = [1, 1, 1]} : vector<4x16x20xf32> to vector<4x16x16xf32>
    %42 = vector.extract_strided_slice %40 {offsets = [0, 0, 1], sizes = [4, 16, 16], strides = [1, 1, 1]} : vector<4x16x20xf32> to vector<4x16x16xf32>
    %43 = arith.addf %41, %42 : vector<4x16x16xf32>
    %44 = vector.extract_strided_slice %40 {offsets = [0, 0, 2], sizes = [4, 16, 16], strides = [1, 1, 1]} : vector<4x16x20xf32> to vector<4x16x16xf32>
    %45 = arith.addf %43, %44 : vector<4x16x16xf32>
    %46 = vector.extract_strided_slice %40 {offsets = [0, 0, 3], sizes = [4, 16, 16], strides = [1, 1, 1]} : vector<4x16x20xf32> to vector<4x16x16xf32>
    %47 = arith.addf %45, %46 : vector<4x16x16xf32>
    %48 = vector.extract_strided_slice %40 {offsets = [0, 0, 4], sizes = [4, 16, 16], strides = [1, 1, 1]} : vector<4x16x20xf32> to vector<4x16x16xf32>
    %49 = arith.addf %47, %48 : vector<4x16x16xf32>
    %cst = arith.constant 4.000000e-02 : f32
    %50 = vector.broadcast %cst : f32 to vector<4x16x16xf32>
    %51 = arith.mulf %24, %50 : vector<4x16x16xf32>
    %cst_2 = arith.constant 4.000000e-02 : f32
    %52 = vector.broadcast %cst_2 : f32 to vector<4x16x16xf32>
    %53 = arith.mulf %49, %52 : vector<4x16x16xf32>
    %54 = arith.mulf %51, %51 : vector<4x16x16xf32>
    %55 = arith.subf %53, %54 : vector<4x16x16xf32>
    %c0_3 = arith.constant 0 : index
    %c0_4 = arith.constant 0 : index
    %c0_5 = arith.constant 0 : index
    %56 = vector.load %arg2[%c0_3, %c0_4, %c0_5] : memref<4x16x16xf32, #tpu.memory_space<vmem>>, vector<4x16x16xf32>
    tpu.vector_store %arg2[%c0_3, %c0_4, %c0_5], %55 {strides = array<i32>} : memref<4x16x16xf32, #tpu.memory_space<vmem>>, vector<4x16x16xf32>,
    return
  }
  func.func @transform_0(%arg0: i32) -> (i32, i32, i32) {
    %c0_i32 = arith.constant 0 : i32
    %c0_i32_0 = arith.constant 0 : i32
    %c0_i32_1 = arith.constant 0 : i32
    return %arg0, %c0_i32, %c0_i32_0 : i32, i32, i32
  }
  func.func @transform_1(%arg0: i32) -> (i32, i32, i32) {
    %c0_i32 = arith.constant 0 : i32
    %c0_i32_0 = arith.constant 0 : i32
    %c0_i32_1 = arith.constant 0 : i32
    return %arg0, %c0_i32, %c0_i32_0 : i32, i32, i32
  }
}

</mosaic_0001>

<llo_original>
// kernel: tpu_custom_call.1
$region0: #{tpu_custom_call.1}
  #allocation0 [shape = 'u32[]', space=smem, size = 0x4, offset = 0x4, fixed_abs, tag = 'smem constant byte address 0x4 - core index']
  #allocation1 [shape = 'u32[144,128]{1,0:T(1,128)}', space=vmem, size = 0x12000, scoped, tag = 'internal scratch']
  %s0 = inlined_call_operand.hbm [shape: f32[8,16,16], index: 0, kind: input, shape index: {}]
  %s1 = inlined_call_operand.hbm [shape: f32[8,16,16], index: 1, kind: output, shape index: {}]
  %s2 = sld [smem:[#allocation0]]
  $region41: #{tpu_custom_call.1} parent=0
    _
  %s4 = ssub.s32 1, %s2
  %s5 = scalar_select 0, %s4, %s2
  $region1: #{tpu_custom_call.1} parent=0
    #allocation2 [shape = 'u8[65536]{0}', space=vmem, size = 0x10000, scoped, tag = 'input window, operand 0']
    #allocation3 [shape = 's32[2]{0}', space=sflag, size = 0x8, scoped, tag = 'scoped memory for tpu_custom_call.1']
    #allocation4 [shape = 's32[2]{0}', space=sflag, size = 0x8, scoped, tag = 'scoped memory for tpu_custom_call.1']
    #allocation5 [shape = 'u8[65536]{0}', space=vmem, size = 0x10000, scoped, tag = 'output window, operand 0']
    %6 = vsyncpa [#allocation3], 0
    %s7 = scalar_lea.sflag [#allocation3], 1
    %8 = vsyncpa %s7, 0
    %9 = vsyncpa [#allocation4], 0
    %s10 = scalar_lea.sflag [#allocation4], 1
    %11 = vsyncpa %s10, 0
    loop: start=0, step=1, limit=4
    $region2: #{tpu_custom_call.1} parent=1 // loop_pre_header
      _
    $region3: #{tpu_custom_call.1} parent=1 // loop_header
      %s13 = sphi 0, %s17
      %p14 = scmp.ge.s32.totalorder %s13, 4
      %s23 = sphi 0, %s25
      %s26 = sphi 0, %s23
      %s27 = sphi 0, %s26
      %s43 = sphi 0, %s27
      %s49 = sphi 0, %s51
      %s52 = sphi 0, %s49
      %s53 = sphi 0, %s52
      %s69 = sphi 0, %s53
    $region4: #{tpu_custom_call.1} parent=1 // loop_header_branch
      %16 = sbr.rel (%p14) target = $region8
    $region5: #{tpu_custom_call.1} parent=1 // loop_body
      %s18 = ssub.s32 %s13, 1
      %s19 = ssub.s32 %s13, 2
      %s20 = sadd.s32 %s13, 1
      %s21 = ssub.s32 %s13, %s20
      %p22 = scmp.eq.s32.totalorder %s21, 0
      %s24 = sadd.s32 %s23, 1
      %s25 = scalar_select %p22, %s23, %s24
      %p28 = pneg %p22
      %p29 = scmp.eq.s32.totalorder %s13, 1
      %p30 = por %p28, %p29
      %p31 = scmp.ne.s32.totalorder %s23, %s26
      %p32 = scmp.eq.s32.totalorder %s13, 0
      %p33 = por %p31, %p32
      %p34 = scmp.ne.s32.totalorder %s23, %s26
      %p35 = scmp.eq.s32.totalorder %s18, 1
      %p36 = por %p34, %p35
      %p37 = scmp.ne.s32.totalorder %s26, %s27
      %p38 = scmp.eq.s32.totalorder %s18, 0
      %p39 = por %p37, %p38
      %p40 = scmp.ne.s32.totalorder %s26, %s27
      %p41 = scmp.eq.s32.totalorder %s19, 1
      %p42 = por %p40, %p41
      %p44 = scmp.ne.s32.totalorder %s27, %s43
      %p45 = scmp.eq.s32.totalorder %s19, 0
      %p46 = por %p44, %p45
      %s47 = ssub.s32 %s13, %s20
      %p48 = scmp.eq.s32.totalorder %s47, 0
      %s50 = sadd.s32 %s49, 1
      %s51 = scalar_select %p48, %s49, %s50
      %p54 = pneg %p48
      %p55 = scmp.eq.s32.totalorder %s13, 1
      %p56 = por %p54, %p55
      %p57 = scmp.ne.s32.totalorder %s49, %s52
      %p58 = scmp.eq.s32.totalorder %s13, 0
      %p59 = por %p57, %p58
      %p60 = scmp.ne.s32.totalorder %s49, %s52
      %p61 = scmp.eq.s32.totalorder %s18, 1
      %p62 = por %p60, %p61
      %p63 = scmp.ne.s32.totalorder %s52, %s53
      %p64 = scmp.eq.s32.totalorder %s18, 0
      %p65 = por %p63, %p64
      %p66 = scmp.ne.s32.totalorder %s52, %s53
      %p67 = scmp.eq.s32.totalorder %s19, 1
      %p68 = por %p66, %p67
      %p70 = scmp.ne.s32.totalorder %s53, %s69
      %p71 = scmp.eq.s32.totalorder %s19, 0
      %p72 = por %p70, %p71
      %p73 = scmp.le.s32.totalorder 1, %s13
      %p74 = scmp.lt.s32.totalorder %s13, 3
      %p75 = pnand %p73, %p74
      %p76 = pneg %p75
      // Predicated region
      $region9: #{tpu_custom_call.1} parent=5 // pred_check
        _
      $region10: #{tpu_custom_call.1} parent=5 // pred_check_branch
        %78 = sbr.rel (%p75) target = $region12
      $region11: #{tpu_custom_call.1} parent=5 // pred_region
        %s79 = ssub.s32 %s13, 1
      $region12: #{tpu_custom_call.1} parent=5 // pred_fallthru
        _
      %p80 = scmp.lt.s32.totalorder %s13, 2
      // Predicated region
      $region13: #{tpu_custom_call.1} parent=5 // pred_check
        %p81 = pneg %p80
      $region14: #{tpu_custom_call.1} parent=5 // pred_check_branch
        %83 = sbr.rel (%p81) target = $region16
      $region15: #{tpu_custom_call.1} parent=5 // pred_region
        // Predicated region
        $region17: #{tpu_custom_call.1} parent=15 // pred_check
          %p84 = pneg %p33
        $region18: #{tpu_custom_call.1} parent=15 // pred_check_branch
          %86 = sbr.rel (%p84) target = $region20
        $region19: #{tpu_custom_call.1} parent=15 // pred_region
          %s87 = sand.u32 %s23, 1
          %s88 = scalar_lea.sflag [#allocation3], %s87
          %s89 = sand.u32 %s23, 1
          %s90 = smul.addr %s89, 64
          %s91 = scalar_lea.vmem [#allocation2], %s90
          %s92 = smul.u32 4, %s13
          %s94 = ssub.s32 1024, 1024
          %95 = vsyncadd %s88, %s94
          %s96 = smul.addr %s92, 2
          %s97 = smul.addr %s96, 128
          %s98 = scalar_lea.hbm %s0, %s97
          %s99 = sshll.u32 %s91, 4
          %s100 = int_to_ptr.vmem [resolvable:$true] %s99
          %105 = dma.hbm_to_vmem [thread:$0]  %s98, 1024, %s100, %s88, 128, 128, 8
        $region20: #{tpu_custom_call.1} parent=15 // pred_fallthru
          _
      $region16: #{tpu_custom_call.1} parent=5 // pred_fallthru
        _
      %p106 = scmp.le.s32.totalorder 1, %s13
      %p107 = scmp.lt.s32.totalorder %s13, 3
      %p108 = pnand %p106, %p107
      %p109 = pneg %p108
      // Predicated region
      $region21: #{tpu_custom_call.1} parent=5 // pred_check
        _
      $region22: #{tpu_custom_call.1} parent=5 // pred_check_branch
        %111 = sbr.rel (%p108) target = $region24
      $region23: #{tpu_custom_call.1} parent=5 // pred_region
        %s112 = ssub.s32 %s13, 1
        %s113 = sand.u32 %s26, 1
        %s114 = scalar_lea.sflag [#allocation3], %s113
        %s115 = sand.u32 %s26, 1
        %s116 = smul.addr %s115, 64
        %s117 = scalar_lea.vmem [#allocation2], %s116
        // Predicated region
        $region25: #{tpu_custom_call.1} parent=23 // pred_check
          %p118 = pneg %p39
        $region26: #{tpu_custom_call.1} parent=23 // pred_check_branch
          %120 = sbr.rel (%p118) target = $region28
        $region27: #{tpu_custom_call.1} parent=23 // pred_region
          %121 = dma.done %s114, 1024
        $region28: #{tpu_custom_call.1} parent=23 // pred_fallthru
          _
        %s122 = sand.u32 %s26, 1
        %s123 = scalar_lea.sflag [#allocation3], %s122
        %s124 = sand.u32 %s26, 1
        %s125 = smul.addr %s124, 64
        %s126 = scalar_lea.vmem [#allocation2], %s125
        %p127 = pneg %p39
        %p128 = pneg %p36
        %p129 = pneg %p65
        %p130 = pneg %p62
        %s131 = sand.u32 %s52, 1
        %s132 = scalar_lea.sflag [#allocation4], %s131
        %s133 = sand.u32 %s52, 1
        %s134 = smul.addr %s133, 64
        %s135 = scalar_lea.vmem [#allocation5], %s134
        %s136 = smul.u32 4, %s18
        %s137 = smul.u32 4, %s18
        %v138 = vld [vmem:[%s117] sm:$0xff]
        %v139 = vld [vmem:[%s117 + $0x8] sm:$0xff]
        %v140 = vld [vmem:[%s117 + $0x10] sm:$0xff]
        %v141 = vld [vmem:[%s117 + $0x18] sm:$0xff]
        %v142 = vld [vmem:[%s117 + $0x20] sm:$0xff]
        %v143 = vld [vmem:[%s117 + $0x28] sm:$0xff]
        %v144 = vld [vmem:[%s117 + $0x30] sm:$0xff]
        %v145 = vld [vmem:[%s117 + $0x38] sm:$0xff]
        %v150 = vrot.slane %v139, 6
        %v151 = vrot.slane %v141, 6
        %v152 = vrot.slane %v143, 6
        %v153 = vrot.slane %v145, 6
        %vm162 = vcmask 1041408
        %v163 = vrot.slane %v138, 6
        %v164 = vsel %vm162, %v163, %v150
        %v165 = vrot.slane %v140, 6
        %v166 = vsel %vm162, %v165, %v151
        %v167 = vrot.slane %v142, 6
        %v168 = vsel %vm162, %v167, %v152
        %v169 = vrot.slane %v144, 6
        %v170 = vsel %vm162, %v169, %v153
        %v179 = vsel %vm162, %v150, %v163
        %v180 = vsel %vm162, %v151, %v165
        %v181 = vsel %vm162, %v152, %v167
        %v182 = vsel %vm162, %v153, %v169
        %vm187 = vcmask 1046528
        %v188 = vrot.slane %v179, 1
        %v189 = vrot.slane %v164, 1
        %v190 = vsel %vm187, %v188, %v189
        %v191 = vsel %vm187, %v189, %v188
        %v192 = vrot.slane %v180, 1
        %v193 = vrot.slane %v166, 1
        %v194 = vsel %vm187, %v192, %v193
        %v195 = vsel %vm187, %v193, %v192
        %v196 = vrot.slane %v181, 1
        %v197 = vrot.slane %v168, 1
        %v198 = vsel %vm187, %v196, %v197
        %v199 = vsel %vm187, %v197, %v196
        %v200 = vrot.slane %v182, 1
        %v201 = vrot.slane %v170, 1
        %v202 = vsel %vm187, %v200, %v201
        %v203 = vsel %vm187, %v201, %v200
        %v212 = vadd.f32 %v179, %v190
        %v213 = vadd.f32 %v164, %v191
        %v214 = vadd.f32 %v180, %v194
        %v215 = vadd.f32 %v166, %v195
        %v216 = vadd.f32 %v181, %v198
        %v217 = vadd.f32 %v168, %v199
        %v218 = vadd.f32 %v182, %v202
        %v219 = vadd.f32 %v170, %v203
        %vm220 = vcmask 1045504
        %v221 = vrot.slane %v179, 2
        %v222 = vrot.slane %v164, 2
        %v223 = vsel %vm220, %v221, %v222
        %v224 = vsel %vm220, %v222, %v221
        %v225 = vrot.slane %v180, 2
        %v226 = vrot.slane %v166, 2
        %v227 = vsel %vm220, %v225, %v226
        %v228 = vsel %vm220, %v226, %v225
        %v229 = vrot.slane %v181, 2
        %v230 = vrot.slane %v168, 2
        %v231 = vsel %vm220, %v229, %v230
        %v232 = vsel %vm220, %v230, %v229
        %v233 = vrot.slane %v182, 2
        %v234 = vrot.slane %v170, 2
        %v235 = vsel %vm220, %v233, %v234
        %v236 = vsel %vm220, %v234, %v233
        %v245 = vadd.f32 %v212, %v223
        %v246 = vadd.f32 %v213, %v224
        %v247 = vadd.f32 %v214, %v227
        %v248 = vadd.f32 %v215, %v228
        %v249 = vadd.f32 %v216, %v231
        %v250 = vadd.f32 %v217, %v232
        %v251 = vadd.f32 %v218, %v235
        %v252 = vadd.f32 %v219, %v236
        %vm253 = vcmask 1044480
        %v254 = vrot.slane %v179, 3
        %v255 = vrot.slane %v164, 3
        %v256 = vsel %vm253, %v254, %v255
        %v257 = vsel %vm253, %v255, %v254
        %v258 = vrot.slane %v180, 3
        %v259 = vrot.slane %v166, 3
        %v260 = vsel %vm253, %v258, %v259
        %v261 = vsel %vm253, %v259, %v258
        %v262 = vrot.slane %v181, 3
        %v263 = vrot.slane %v168, 3
        %v264 = vsel %vm253, %v262, %v263
        %v265 = vsel %vm253, %v263, %v262
        %v266 = vrot.slane %v182, 3
        %v267 = vrot.slane %v170, 3
        %v268 = vsel %vm253, %v266, %v267
        %v269 = vsel %vm253, %v267, %v266
        %v278 = vadd.f32 %v245, %v256
        %v279 = vadd.f32 %v246, %v257
        %v280 = vadd.f32 %v247, %v260
        %v281 = vadd.f32 %v248, %v261
        %v282 = vadd.f32 %v249, %v264
        %v283 = vadd.f32 %v250, %v265
        %v284 = vadd.f32 %v251, %v268
        %v285 = vadd.f32 %v252, %v269
        %vm286 = vcmask 1043456
        %v287 = vrot.slane %v179, 4
        %v288 = vrot.slane %v164, 4
        %v289 = vsel %vm286, %v287, %v288
        %v290 = vsel %vm286, %v288, %v287
        %v291 = vrot.slane %v180, 4
        %v292 = vrot.slane %v166, 4
        %v293 = vsel %vm286, %v291, %v292
        %v294 = vsel %vm286, %v292, %v291
        %v295 = vrot.slane %v181, 4
        %v296 = vrot.slane %v168, 4
        %v297 = vsel %vm286, %v295, %v296
        %v298 = vsel %vm286, %v296, %v295
        %v299 = vrot.slane %v182, 4
        %v300 = vrot.slane %v170, 4
        %v301 = vsel %vm286, %v299, %v300
        %v302 = vsel %vm286, %v300, %v299
        %v311 = vadd.f32 %v278, %v289
        %v312 = vadd.f32 %v279, %v290
        %v313 = vadd.f32 %v280, %v293
        %v314 = vadd.f32 %v281, %v294
        %v315 = vadd.f32 %v282, %v297
        %v316 = vadd.f32 %v283, %v298
        %v317 = vadd.f32 %v284, %v301
        %v318 = vadd.f32 %v285, %v302
        %327 = vrot.lane.b32.xlu0 %v311, 114
        %v328 = vpop.permute.xlu0 %327
        %329 = vrot.lane.b32.xlu0 %v312, 114
        %v330 = vpop.permute.xlu0 %329
        %331 = vrot.lane.b32.xlu0 %v313, 114
        %v332 = vpop.permute.xlu0 %331
        %333 = vrot.lane.b32.xlu0 %v314, 114
        %v334 = vpop.permute.xlu0 %333
        %335 = vrot.lane.b32.xlu0 %v315, 114
        %v336 = vpop.permute.xlu0 %335
        %337 = vrot.lane.b32.xlu0 %v316, 114
        %v338 = vpop.permute.xlu0 %337
        %339 = vrot.lane.b32.xlu0 %v317, 114
        %v340 = vpop.permute.xlu0 %339
        %341 = vrot.lane.b32.xlu0 %v318, 114
        %v342 = vpop.permute.xlu0 %341
        %351 = vrot.lane.b32.xlu0 %v311, 2
        %v352 = vpop.permute.xlu0 %351
        %353 = vrot.lane.b32.xlu0 %v312, 2
        %v354 = vpop.permute.xlu0 %353
        %355 = vrot.lane.b32.xlu0 %v313, 2
        %v356 = vpop.permute.xlu0 %355
        %357 = vrot.lane.b32.xlu0 %v314, 2
        %v358 = vpop.permute.xlu0 %357
        %359 = vrot.lane.b32.xlu0 %v315, 2
        %v360 = vpop.permute.xlu0 %359
        %361 = vrot.lane.b32.xlu0 %v316, 2
        %v362 = vpop.permute.xlu0 %361
        %363 = vrot.lane.b32.xlu0 %v317, 2
        %v364 = vpop.permute.xlu0 %363
        %365 = vrot.lane.b32.xlu0 %v318, 2
        %v366 = vpop.permute.xlu0 %365
        %375 = vrot.lane.b32.xlu0 %v311, 18
        %v376 = vpop.permute.xlu0 %375
        %377 = vrot.lane.b32.xlu0 %v312, 18
        %v378 = vpop.permute.xlu0 %377
        %379 = vrot.lane.b32.xlu0 %v313, 18
        %v380 = vpop.permute.xlu0 %379
        %381 = vrot.lane.b32.xlu0 %v314, 18
        %v382 = vpop.permute.xlu0 %381
        %383 = vrot.lane.b32.xlu0 %v315, 18
        %v384 = vpop.permute.xlu0 %383
        %385 = vrot.lane.b32.xlu0 %v316, 18
        %v386 = vpop.permute.xlu0 %385
        %387 = vrot.lane.b32.xlu0 %v317, 18
        %v388 = vpop.permute.xlu0 %387
        %389 = vrot.lane.b32.xlu0 %v318, 18
        %v390 = vpop.permute.xlu0 %389
        %vm399 = vcmask 15360
        %v400 = vsel %vm399, %v328, %v352
        %v401 = vsel %vm399, %v330, %v354
        %v402 = vsel %vm399, %v332, %v356
        %v403 = vsel %vm399, %v334, %v358
        %v404 = vsel %vm399, %v336, %v360
        %v405 = vsel %vm399, %v338, %v362
        %v406 = vsel %vm399, %v340, %v364
        %v407 = vsel %vm399, %v342, %v366
        %vm408 = vcmask 146432
        %v409 = vsel %vm408, %v400, %v376
        %v410 = vsel %vm408, %v401, %v378
        %v411 = vsel %vm408, %v402, %v380
        %v412 = vsel %vm408, %v403, %v382
        %v413 = vsel %vm408, %v404, %v384
        %v414 = vsel %vm408, %v405, %v386
        %v415 = vsel %vm408, %v406, %v388
        %v416 = vsel %vm408, %v407, %v390
        %425 = vrot.lane.b32.xlu0 %v409, 127
        %v426 = vpop.permute.xlu0 %425
        %427 = vrot.lane.b32.xlu0 %v410, 127
        %v428 = vpop.permute.xlu0 %427
        %429 = vrot.lane.b32.xlu0 %v411, 127
        %v430 = vpop.permute.xlu0 %429
        %431 = vrot.lane.b32.xlu0 %v412, 127
        %v432 = vpop.permute.xlu0 %431
        %433 = vrot.lane.b32.xlu0 %v413, 127
        %v434 = vpop.permute.xlu0 %433
        %435 = vrot.lane.b32.xlu0 %v414, 127
        %v436 = vpop.permute.xlu0 %435
        %437 = vrot.lane.b32.xlu0 %v415, 127
        %v438 = vpop.permute.xlu0 %437
        %439 = vrot.lane.b32.xlu0 %v416, 127
        %v440 = vpop.permute.xlu0 %439
        %v449 = vadd.f32 %v409, %v426
        %v450 = vadd.f32 %v410, %v428
        %v451 = vadd.f32 %v411, %v430
        %v452 = vadd.f32 %v412, %v432
        %v453 = vadd.f32 %v413, %v434
        %v454 = vadd.f32 %v414, %v436
        %v455 = vadd.f32 %v415, %v438
        %v456 = vadd.f32 %v416, %v440
        %457 = vrot.lane.b32.xlu0 %v409, 126
        %v458 = vpop.permute.xlu0 %457
        %459 = vrot.lane.b32.xlu0 %v410, 126
        %v460 = vpop.permute.xlu0 %459
        %461 = vrot.lane.b32.xlu0 %v411, 126
        %v462 = vpop.permute.xlu0 %461
        %463 = vrot.lane.b32.xlu0 %v412, 126
        %v464 = vpop.permute.xlu0 %463
        %465 = vrot.lane.b32.xlu0 %v413, 126
        %v466 = vpop.permute.xlu0 %465
        %467 = vrot.lane.b32.xlu0 %v414, 126
        %v468 = vpop.permute.xlu0 %467
        %469 = vrot.lane.b32.xlu0 %v415, 126
        %v470 = vpop.permute.xlu0 %469
        %471 = vrot.lane.b32.xlu0 %v416, 126
        %v472 = vpop.permute.xlu0 %471
        %v481 = vadd.f32 %v449, %v458
        %v482 = vadd.f32 %v450, %v460
        %v483 = vadd.f32 %v451, %v462
        %v484 = vadd.f32 %v452, %v464
        %v485 = vadd.f32 %v453, %v466
        %v486 = vadd.f32 %v454, %v468
        %v487 = vadd.f32 %v455, %v470
        %v488 = vadd.f32 %v456, %v472
        %489 = vrot.lane.b32.xlu0 %v409, 125
        %v490 = vpop.permute.xlu0 %489
        %491 = vrot.lane.b32.xlu0 %v410, 125
        %v492 = vpop.permute.xlu0 %491
        %493 = vrot.lane.b32.xlu0 %v411, 125
        %v494 = vpop.permute.xlu0 %493
        %495 = vrot.lane.b32.xlu0 %v412, 125
        %v496 = vpop.permute.xlu0 %495
        %497 = vrot.lane.b32.xlu0 %v413, 125
        %v498 = vpop.permute.xlu0 %497
        %499 = vrot.lane.b32.xlu0 %v414, 125
        %v500 = vpop.permute.xlu0 %499
        %501 = vrot.lane.b32.xlu0 %v415, 125
        %v502 = vpop.permute.xlu0 %501
        %503 = vrot.lane.b32.xlu0 %v416, 125
        %v504 = vpop.permute.xlu0 %503
        %v513 = vadd.f32 %v481, %v490
        %v514 = vadd.f32 %v482, %v492
        %v515 = vadd.f32 %v483, %v494
        %v516 = vadd.f32 %v484, %v496
        %v517 = vadd.f32 %v485, %v498
        %v518 = vadd.f32 %v486, %v500
        %v519 = vadd.f32 %v487, %v502
        %v520 = vadd.f32 %v488, %v504
        %521 = vrot.lane.b32.xlu0 %v409, 124
        %v522 = vpop.permute.xlu0 %521
        %523 = vrot.lane.b32.xlu0 %v410, 124
        %v524 = vpop.permute.xlu0 %523
        %525 = vrot.lane.b32.xlu0 %v411, 124
        %v526 = vpop.permute.xlu0 %525
        %527 = vrot.lane.b32.xlu0 %v412, 124
        %v528 = vpop.permute.xlu0 %527
        %529 = vrot.lane.b32.xlu0 %v413, 124
        %v530 = vpop.permute.xlu0 %529
        %531 = vrot.lane.b32.xlu0 %v414, 124
        %v532 = vpop.permute.xlu0 %531
        %533 = vrot.lane.b32.xlu0 %v415, 124
        %v534 = vpop.permute.xlu0 %533
        %535 = vrot.lane.b32.xlu0 %v416, 124
        %v536 = vpop.permute.xlu0 %535
        %v545 = vadd.f32 %v513, %v522
        %v546 = vadd.f32 %v514, %v524
        %v547 = vadd.f32 %v515, %v526
        %v548 = vadd.f32 %v516, %v528
        %v549 = vadd.f32 %v517, %v530
        %v550 = vadd.f32 %v518, %v532
        %v551 = vadd.f32 %v519, %v534
        %v552 = vadd.f32 %v520, %v536
        %v553 = vmul.f32 %v138, %v138
        %v554 = vmul.f32 %v139, %v139
        %v555 = vmul.f32 %v140, %v140
        %v556 = vmul.f32 %v141, %v141
        %v557 = vmul.f32 %v142, %v142
        %v558 = vmul.f32 %v143, %v143
        %v559 = vmul.f32 %v144, %v144
        %v560 = vmul.f32 %v145, %v145
        %v565 = vrot.slane %v554, 6
        %v566 = vrot.slane %v556, 6
        %v567 = vrot.slane %v558, 6
        %v568 = vrot.slane %v560, 6
        %v577 = vrot.slane %v553, 6
        %v578 = vsel %vm162, %v577, %v565
        %v579 = vrot.slane %v555, 6
        %v580 = vsel %vm162, %v579, %v566
        %v581 = vrot.slane %v557, 6
        %v582 = vsel %vm162, %v581, %v567
        %v583 = vrot.slane %v559, 6
        %v584 = vsel %vm162, %v583, %v568
        %v593 = vsel %vm162, %v565, %v577
        %v594 = vsel %vm162, %v566, %v579
        %v595 = vsel %vm162, %v567, %v581
        %v596 = vsel %vm162, %v568, %v583
        %v601 = vrot.slane %v593, 1
        %v602 = vrot.slane %v578, 1
        %v603 = vsel %vm187, %v601, %v602
        %v604 = vsel %vm187, %v602, %v601
        %v605 = vrot.slane %v594, 1
        %v606 = vrot.slane %v580, 1
        %v607 = vsel %vm187, %v605, %v606
        %v608 = vsel %vm187, %v606, %v605
        %v609 = vrot.slane %v595, 1
        %v610 = vrot.slane %v582, 1
        %v611 = vsel %vm187, %v609, %v610
        %v612 = vsel %vm187, %v610, %v609
        %v613 = vrot.slane %v596, 1
        %v614 = vrot.slane %v584, 1
        %v615 = vsel %vm187, %v613, %v614
        %v616 = vsel %vm187, %v614, %v613
        %v625 = vadd.f32 %v593, %v603
        %v626 = vadd.f32 %v578, %v604
        %v627 = vadd.f32 %v594, %v607
        %v628 = vadd.f32 %v580, %v608
        %v629 = vadd.f32 %v595, %v611
        %v630 = vadd.f32 %v582, %v612
        %v631 = vadd.f32 %v596, %v615
        %v632 = vadd.f32 %v584, %v616
        %v633 = vrot.slane %v593, 2
        %v634 = vrot.slane %v578, 2
        %v635 = vsel %vm220, %v633, %v634
        %v636 = vsel %vm220, %v634, %v633
        %v637 = vrot.slane %v594, 2
        %v638 = vrot.slane %v580, 2
        %v639 = vsel %vm220, %v637, %v638
        %v640 = vsel %vm220, %v638, %v637
        %v641 = vrot.slane %v595, 2
        %v642 = vrot.slane %v582, 2
        %v643 = vsel %vm220, %v641, %v642
        %v644 = vsel %vm220, %v642, %v641
        %v645 = vrot.slane %v596, 2
        %v646 = vrot.slane %v584, 2
        %v647 = vsel %vm220, %v645, %v646
        %v648 = vsel %vm220, %v646, %v645
        %v657 = vadd.f32 %v625, %v635
        %v658 = vadd.f32 %v626, %v636
        %v659 = vadd.f32 %v627, %v639
        %v660 = vadd.f32 %v628, %v640
        %v661 = vadd.f32 %v629, %v643
        %v662 = vadd.f32 %v630, %v644
        %v663 = vadd.f32 %v631, %v647
        %v664 = vadd.f32 %v632, %v648
        %v665 = vrot.slane %v593, 3
        %v666 = vrot.slane %v578, 3
        %v667 = vsel %vm253, %v665, %v666
        %v668 = vsel %vm253, %v666, %v665
        %v669 = vrot.slane %v594, 3
        %v670 = vrot.slane %v580, 3
        %v671 = vsel %vm253, %v669, %v670
        %v672 = vsel %vm253, %v670, %v669
        %v673 = vrot.slane %v595, 3
        %v674 = vrot.slane %v582, 3
        %v675 = vsel %vm253, %v673, %v674
        %v676 = vsel %vm253, %v674, %v673
        %v677 = vrot.slane %v596, 3
        %v678 = vrot.slane %v584, 3
        %v679 = vsel %vm253, %v677, %v678
        %v680 = vsel %vm253, %v678, %v677
        %v689 = vadd.f32 %v657, %v667
        %v690 = vadd.f32 %v658, %v668
        %v691 = vadd.f32 %v659, %v671
        %v692 = vadd.f32 %v660, %v672
        %v693 = vadd.f32 %v661, %v675
        %v694 = vadd.f32 %v662, %v676
        %v695 = vadd.f32 %v663, %v679
        %v696 = vadd.f32 %v664, %v680
        %v697 = vrot.slane %v593, 4
        %v698 = vrot.slane %v578, 4
        %v699 = vsel %vm286, %v697, %v698
        %v700 = vsel %vm286, %v698, %v697
        %v701 = vrot.slane %v594, 4
        %v702 = vrot.slane %v580, 4
        %v703 = vsel %vm286, %v701, %v702
        %v704 = vsel %vm286, %v702, %v701
        %v705 = vrot.slane %v595, 4
        %v706 = vrot.slane %v582, 4
        %v707 = vsel %vm286, %v705, %v706
        %v708 = vsel %vm286, %v706, %v705
        %v709 = vrot.slane %v596, 4
        %v710 = vrot.slane %v584, 4
        %v711 = vsel %vm286, %v709, %v710
        %v712 = vsel %vm286, %v710, %v709
        %v721 = vadd.f32 %v689, %v699
        %v722 = vadd.f32 %v690, %v700
        %v723 = vadd.f32 %v691, %v703
        %v724 = vadd.f32 %v692, %v704
        %v725 = vadd.f32 %v693, %v707
        %v726 = vadd.f32 %v694, %v708
        %v727 = vadd.f32 %v695, %v711
        %v728 = vadd.f32 %v696, %v712
        %737 = vrot.lane.b32.xlu0 %v721, 114
        %v738 = vpop.permute.xlu0 %737
        %739 = vrot.lane.b32.xlu0 %v722, 114
        %v740 = vpop.permute.xlu0 %739
        %741 = vrot.lane.b32.xlu0 %v723, 114
        %v742 = vpop.permute.xlu0 %741
        %743 = vrot.lane.b32.xlu0 %v724, 114
        %v744 = vpop.permute.xlu0 %743
        %745 = vrot.lane.b32.xlu0 %v725, 114
        %v746 = vpop.permute.xlu0 %745
        %747 = vrot.lane.b32.xlu0 %v726, 114
        %v748 = vpop.permute.xlu0 %747
        %749 = vrot.lane.b32.xlu0 %v727, 114
        %v750 = vpop.permute.xlu0 %749
        %751 = vrot.lane.b32.xlu0 %v728, 114
        %v752 = vpop.permute.xlu0 %751
        %761 = vrot.lane.b32.xlu0 %v721, 2
        %v762 = vpop.permute.xlu0 %761
        %763 = vrot.lane.b32.xlu0 %v722, 2
        %v764 = vpop.permute.xlu0 %763
        %765 = vrot.lane.b32.xlu0 %v723, 2
        %v766 = vpop.permute.xlu0 %765
        %767 = vrot.lane.b32.xlu0 %v724, 2
        %v768 = vpop.permute.xlu0 %767
        %769 = vrot.lane.b32.xlu0 %v725, 2
        %v770 = vpop.permute.xlu0 %769
        %771 = vrot.lane.b32.xlu0 %v726, 2
        %v772 = vpop.permute.xlu0 %771
        %773 = vrot.lane.b32.xlu0 %v727, 2
        %v774 = vpop.permute.xlu0 %773
        %775 = vrot.lane.b32.xlu0 %v728, 2
        %v776 = vpop.permute.xlu0 %775
        %785 = vrot.lane.b32.xlu0 %v721, 18
        %v786 = vpop.permute.xlu0 %785
        %787 = vrot.lane.b32.xlu0 %v722, 18
        %v788 = vpop.permute.xlu0 %787
        %789 = vrot.lane.b32.xlu0 %v723, 18
        %v790 = vpop.permute.xlu0 %789
        %791 = vrot.lane.b32.xlu0 %v724, 18
        %v792 = vpop.permute.xlu0 %791
        %793 = vrot.lane.b32.xlu0 %v725, 18
        %v794 = vpop.permute.xlu0 %793
        %795 = vrot.lane.b32.xlu0 %v726, 18
        %v796 = vpop.permute.xlu0 %795
        %797 = vrot.lane.b32.xlu0 %v727, 18
        %v798 = vpop.permute.xlu0 %797
        %799 = vrot.lane.b32.xlu0 %v728, 18
        %v800 = vpop.permute.xlu0 %799
        %v809 = vsel %vm399, %v738, %v762
        %v810 = vsel %vm399, %v740, %v764
        %v811 = vsel %vm399, %v742, %v766
        %v812 = vsel %vm399, %v744, %v768
        %v813 = vsel %vm399, %v746, %v770
        %v814 = vsel %vm399, %v748, %v772
        %v815 = vsel %vm399, %v750, %v774
        %v816 = vsel %vm399, %v752, %v776
        %v817 = vsel %vm408, %v809, %v786
        %v818 = vsel %vm408, %v810, %v788
        %v819 = vsel %vm408, %v811, %v790
        %v820 = vsel %vm408, %v812, %v792
        %v821 = vsel %vm408, %v813, %v794
        %v822 = vsel %vm408, %v814, %v796
        %v823 = vsel %vm408, %v815, %v798
        %v824 = vsel %vm408, %v816, %v800
        %833 = vrot.lane.b32.xlu0 %v817, 127
        %v834 = vpop.permute.xlu0 %833
        %835 = vrot.lane.b32.xlu0 %v818, 127
        %v836 = vpop.permute.xlu0 %835
        %837 = vrot.lane.b32.xlu0 %v819, 127
        %v838 = vpop.permute.xlu0 %837
        %839 = vrot.lane.b32.xlu0 %v820, 127
        %v840 = vpop.permute.xlu0 %839
        %841 = vrot.lane.b32.xlu0 %v821, 127
        %v842 = vpop.permute.xlu0 %841
        %843 = vrot.lane.b32.xlu0 %v822, 127
        %v844 = vpop.permute.xlu0 %843
        %845 = vrot.lane.b32.xlu0 %v823, 127
        %v846 = vpop.permute.xlu0 %845
        %847 = vrot.lane.b32.xlu0 %v824, 127
        %v848 = vpop.permute.xlu0 %847
        %v857 = vadd.f32 %v817, %v834
        %v858 = vadd.f32 %v818, %v836
        %v859 = vadd.f32 %v819, %v838
        %v860 = vadd.f32 %v820, %v840
        %v861 = vadd.f32 %v821, %v842
        %v862 = vadd.f32 %v822, %v844
        %v863 = vadd.f32 %v823, %v846
        %v864 = vadd.f32 %v824, %v848
        %865 = vrot.lane.b32.xlu0 %v817, 126
        %v866 = vpop.permute.xlu0 %865
        %867 = vrot.lane.b32.xlu0 %v818, 126
        %v868 = vpop.permute.xlu0 %867
        %869 = vrot.lane.b32.xlu0 %v819, 126
        %v870 = vpop.permute.xlu0 %869
        %871 = vrot.lane.b32.xlu0 %v820, 126
        %v872 = vpop.permute.xlu0 %871
        %873 = vrot.lane.b32.xlu0 %v821, 126
        %v874 = vpop.permute.xlu0 %873
        %875 = vrot.lane.b32.xlu0 %v822, 126
        %v876 = vpop.permute.xlu0 %875
        %877 = vrot.lane.b32.xlu0 %v823, 126
        %v878 = vpop.permute.xlu0 %877
        %879 = vrot.lane.b32.xlu0 %v824, 126
        %v880 = vpop.permute.xlu0 %879
        %v889 = vadd.f32 %v857, %v866
        %v890 = vadd.f32 %v858, %v868
        %v891 = vadd.f32 %v859, %v870
        %v892 = vadd.f32 %v860, %v872
        %v893 = vadd.f32 %v861, %v874
        %v894 = vadd.f32 %v862, %v876
        %v895 = vadd.f32 %v863, %v878
        %v896 = vadd.f32 %v864, %v880
        %897 = vrot.lane.b32.xlu0 %v817, 125
        %v898 = vpop.permute.xlu0 %897
        %899 = vrot.lane.b32.xlu0 %v818, 125
        %v900 = vpop.permute.xlu0 %899
        %901 = vrot.lane.b32.xlu0 %v819, 125
        %v902 = vpop.permute.xlu0 %901
        %903 = vrot.lane.b32.xlu0 %v820, 125
        %v904 = vpop.permute.xlu0 %903
        %905 = vrot.lane.b32.xlu0 %v821, 125
        %v906 = vpop.permute.xlu0 %905
        %907 = vrot.lane.b32.xlu0 %v822, 125
        %v908 = vpop.permute.xlu0 %907
        %909 = vrot.lane.b32.xlu0 %v823, 125
        %v910 = vpop.permute.xlu0 %909
        %911 = vrot.lane.b32.xlu0 %v824, 125
        %v912 = vpop.permute.xlu0 %911
        %v921 = vadd.f32 %v889, %v898
        %v922 = vadd.f32 %v890, %v900
        %v923 = vadd.f32 %v891, %v902
        %v924 = vadd.f32 %v892, %v904
        %v925 = vadd.f32 %v893, %v906
        %v926 = vadd.f32 %v894, %v908
        %v927 = vadd.f32 %v895, %v910
        %v928 = vadd.f32 %v896, %v912
        %929 = vrot.lane.b32.xlu0 %v817, 124
        %v930 = vpop.permute.xlu0 %929
        %931 = vrot.lane.b32.xlu0 %v818, 124
        %v932 = vpop.permute.xlu0 %931
        %933 = vrot.lane.b32.xlu0 %v819, 124
        %v934 = vpop.permute.xlu0 %933
        %935 = vrot.lane.b32.xlu0 %v820, 124
        %v936 = vpop.permute.xlu0 %935
        %937 = vrot.lane.b32.xlu0 %v821, 124
        %v938 = vpop.permute.xlu0 %937
        %939 = vrot.lane.b32.xlu0 %v822, 124
        %v940 = vpop.permute.xlu0 %939
        %941 = vrot.lane.b32.xlu0 %v823, 124
        %v942 = vpop.permute.xlu0 %941
        %943 = vrot.lane.b32.xlu0 %v824, 124
        %v944 = vpop.permute.xlu0 %943
        %v953 = vadd.f32 %v921, %v930
        %v954 = vadd.f32 %v922, %v932
        %v955 = vadd.f32 %v923, %v934
        %v956 = vadd.f32 %v924, %v936
        %v957 = vadd.f32 %v925, %v938
        %v958 = vadd.f32 %v926, %v940
        %v959 = vadd.f32 %v927, %v942
        %v960 = vadd.f32 %v928, %v944
        %v961 = vmul.f32 %v545, 0.04
        %v962 = vmul.f32 %v546, 0.04
        %v963 = vmul.f32 %v547, 0.04
        %v964 = vmul.f32 %v548, 0.04
        %v965 = vmul.f32 %v549, 0.04
        %v966 = vmul.f32 %v550, 0.04
        %v967 = vmul.f32 %v551, 0.04
        %v968 = vmul.f32 %v552, 0.04
        %v969 = vmul.f32 %v953, 0.04
        %v970 = vmul.f32 %v954, 0.04
        %v971 = vmul.f32 %v955, 0.04
        %v972 = vmul.f32 %v956, 0.04
        %v973 = vmul.f32 %v957, 0.04
        %v974 = vmul.f32 %v958, 0.04
        %v975 = vmul.f32 %v959, 0.04
        %v976 = vmul.f32 %v960, 0.04
        %v977 = vmul.f32 %v961, %v961
        %v978 = vmul.f32 %v962, %v962
        %v979 = vmul.f32 %v963, %v963
        %v980 = vmul.f32 %v964, %v964
        %v981 = vmul.f32 %v965, %v965
        %v982 = vmul.f32 %v966, %v966
        %v983 = vmul.f32 %v967, %v967
        %v984 = vmul.f32 %v968, %v968
        %v985 = vsub.f32 %v969, %v977
        %v986 = vsub.f32 %v970, %v978
        %v987 = vsub.f32 %v971, %v979
        %v988 = vsub.f32 %v972, %v980
        %v989 = vsub.f32 %v973, %v981
        %v990 = vsub.f32 %v974, %v982
        %v991 = vsub.f32 %v975, %v983
        %v992 = vsub.f32 %v976, %v984
        %vm993 = vcmask 130048
        %994 = vst.msk [vmem:[%s135] sm:$0xff] %vm993, %v985
        %995 = vst.msk [vmem:[%s135 + $0x8] sm:$0xff] %vm993, %v986
        %996 = vst.msk [vmem:[%s135 + $0x10] sm:$0xff] %vm993, %v987
        %997 = vst.msk [vmem:[%s135 + $0x18] sm:$0xff] %vm993, %v988
        %998 = vst.msk [vmem:[%s135 + $0x20] sm:$0xff] %vm993, %v989
        %999 = vst.msk [vmem:[%s135 + $0x28] sm:$0xff] %vm993, %v990
        %1000 = vst.msk [vmem:[%s135 + $0x30] sm:$0xff] %vm993, %v991
        %1001 = vst.msk [vmem:[%s135 + $0x38] sm:$0xff] %vm993, %v992
        %s1002 = sand.u32 %s52, 1
        %s1003 = scalar_lea.sflag [#allocation4], %s1002
        %s1004 = sand.u32 %s52, 1
        %s1005 = smul.addr %s1004, 64
        %s1006 = scalar_lea.vmem [#allocation5], %s1005
        // Predicated region
        $region29: #{tpu_custom_call.1} parent=23 // pred_check
          %p1007 = pneg %p62
        $region30: #{tpu_custom_call.1} parent=23 // pred_check_branch
          %1009 = sbr.rel (%p1007) target = $region32
        $region31: #{tpu_custom_call.1} parent=23 // pred_region
          %s1010 = smul.u32 4, %s18
          %s1012 = ssub.s32 1024, 1024
          %1013 = vsyncadd %s1003, %s1012
          %s1014 = smul.addr %s1010, 2
          %s1015 = smul.addr %s1014, 128
          %s1016 = scalar_lea.hbm %s1, %s1015
          %s1017 = sshll.u32 %s1006, 4
          %s1018 = int_to_ptr.vmem [resolvable:$true] %s1017
          %1023 = dma.vmem_to_hbm [thread:$0]  %s1018, 1024, %s1016, %s1003, 128, 128, 8
        $region32: #{tpu_custom_call.1} parent=23 // pred_fallthru
          _
      $region24: #{tpu_custom_call.1} parent=5 // pred_fallthru
        _
      %p1024 = scmp.le.s32.totalorder 2, %s13
      // Predicated region
      $region33: #{tpu_custom_call.1} parent=5 // pred_check
        %p1025 = pneg %p1024
      $region34: #{tpu_custom_call.1} parent=5 // pred_check_branch
        %1027 = sbr.rel (%p1025) target = $region36
      $region35: #{tpu_custom_call.1} parent=5 // pred_region
        %s1028 = ssub.s32 %s13, 2
        // Predicated region
        $region37: #{tpu_custom_call.1} parent=35 // pred_check
          %p1029 = pneg %p68
        $region38: #{tpu_custom_call.1} parent=35 // pred_check_branch
          %1031 = sbr.rel (%p1029) target = $region40
        $region39: #{tpu_custom_call.1} parent=35 // pred_region
          %s1032 = sand.u32 %s53, 1
          %s1033 = scalar_lea.sflag [#allocation4], %s1032
          %s1034 = sand.u32 %s53, 1
          %s1035 = smul.addr %s1034, 64
          %s1036 = scalar_lea.vmem [#allocation5], %s1035
          %1037 = dma.done %s1033, 1024
        $region40: #{tpu_custom_call.1} parent=35 // pred_fallthru
          _
      $region36: #{tpu_custom_call.1} parent=5 // pred_fallthru
        _
    $region6: #{tpu_custom_call.1} parent=1 // loop_footer
      %s17 = sadd.s32 1, %s13
    $region7: #{tpu_custom_call.1} parent=1 // loop_footer_branch
      %12 = sbr.rel target = $region3
    $region8: #{tpu_custom_call.1} parent=1 // loop_exit
      _
    %1038 = vsyncpa [#allocation3], 1
    %s1039 = scalar_lea.sflag [#allocation3], 1
    %1040 = vsyncpa %s1039, 1
    %1041 = vsyncpa [#allocation4], 1
    %s1042 = scalar_lea.sflag [#allocation4], 1
    %1043 = vsyncpa %s1042, 1

</llo_original>
